<compile_context>
chip_gen: v7x
topology: tpu7x:2x2x1
jax: 0.10.0
libtpu: 0.0.40
codegen_flags: <defaults>
</compile_context>

<pallas_src>
import jax
import jax.numpy as jnp
from jax.experimental import pallas as pl
from jax.experimental.pallas import tpu as pltpu


def affine_kernel(xT_ref, w_ref, b_ref, o_ref):
    """One batch tile of the folded network.

    xT_ref : (F, TN) f32 VMEM — features on sublanes, batch on lanes (lane-dense)
    w_ref  : (F,)    f32 SMEM — folded weight column
    b_ref  : (1,)    f32 SMEM — folded bias
    o_ref  : (1, TN) f32 VMEM — lane-dense output row
    """
    f = xT_ref.shape[0]
    # Unrolled scalar-broadcast multiply-accumulate over the F (=8) sublane rows.
    # Each term is a sublane-offset vld + VPU mul/add; no XLU reduce needed.
    acc = w_ref[0] * xT_ref[pl.ds(0, 1), :]
    for k in range(1, f):
        acc = acc + w_ref[k] * xT_ref[pl.ds(k, 1), :]
    o_ref[...] = acc + b_ref[0]


def fold_params(params):
    """Fold [(W1,b1)...(W5,b5)] (W:(in,out), b:(1,out)) into one affine map."""
    w_tot, b_tot = params[0]
    for w, b in params[1:]:
        b_tot = b_tot @ w + b
        w_tot = w_tot @ w
    return w_tot, b_tot  # (in_dim, out_dim), (1, out_dim)


def _choose_tiling(n, max_tile=32768):
    """Pick a lane tile (multiple of 128), large to amortize per-step overhead,
    but keep >= 2 grid steps so both v7x TensorCores get work."""
    n_pad = pl.cdiv(n, 256) * 256            # multiple of 256 => always splittable in 2
    tile = min(max_tile, n_pad // 2)
    tile = max(128, (tile // 128) * 128)     # lane-aligned
    n_pad = pl.cdiv(n_pad, tile) * tile
    return n_pad, tile


@jax.jit
def mlp_forward(x, params):
    """x: (N, input_dim) f32. params: list of (W, b), W:(in,out), b:(1,out).
    Returns (N, out_dim) — identical semantics to the 5-layer PyTorch forward."""
    n, f = x.shape
    w_tot, b_tot = fold_params(params)       # (f, 1), (1, 1) — folded once, cached by jit
    w_vec = w_tot.reshape(f)                 # (f,)  -> SMEM scalars
    b_vec = b_tot.reshape(1)                 # (1,)  -> SMEM scalar

    n_pad, tile_n = _choose_tiling(n)

    # Lane-dense (features, batch) layout; transpose+pad fuses into one pass under jit.
    xT = jnp.pad(x.T, ((0, 0), (0, n_pad - n)))

    grid = (n_pad // tile_n,)

    out = pl.pallas_call(
        affine_kernel,
        out_shape=jax.ShapeDtypeStruct((1, n_pad), jnp.float32),
        grid=grid,
        in_specs=[
            pl.BlockSpec((f, tile_n), lambda i: (0, i)),   # batch-tiled activations
            pl.BlockSpec(memory_space=pltpu.SMEM),         # folded weights (8 scalars)
            pl.BlockSpec(memory_space=pltpu.SMEM),         # folded bias (1 scalar)
        ],
        out_specs=pl.BlockSpec((1, tile_n), lambda i: (0, i)),  # lane-dense output row
        compiler_params=pltpu.CompilerParams(
            dimension_semantics=("parallel",),
        ),
    )(xT, w_vec, b_vec)

    return out[:, :n].T                       # back to (N, out_dim); fuses under jit


def init_params(key, input_dim, output_dim):
    """Deterministic init mimicking nn.Linear's U(-1/sqrt(fan_in), 1/sqrt(fan_in))."""
    dims = [input_dim, 5, 4, 3, 2, output_dim]
    params = []
    for i in range(len(dims) - 1):
        fan_in, fan_out = dims[i], dims[i + 1]
        key, kw, kb = jax.random.split(key, 3)
        bound = 1.0 / jnp.sqrt(jnp.float32(fan_in))
        w = jax.random.uniform(kw, (fan_in, fan_out), jnp.float32, -bound, bound)
        b = jax.random.uniform(kb, (1, fan_out), jnp.float32, -bound, bound)
        params.append((w, b))
    return params


def reference_forward(x, params):
    """Layer-by-layer reference (matches the PyTorch module exactly)."""
    h = x
    for w, b in params:
        h = h @ w + b
    return h


if __name__ == "__main__":
    key = jax.random.PRNGKey(0)
    key, kx = jax.random.split(key)

    # California housing: 8 input features, 1 regression target.
    input_dim, output_dim = 8, 1
    batch = 500  # non-multiple of the lane tile to exercise the padding path

    x = jax.random.normal(kx, (batch, input_dim), dtype=jnp.float32)
    params = init_params(key, input_dim, output_dim)

    out = mlp_forward(x, params)
    out = jax.block_until_ready(out)

    ref = reference_forward(x, params)
    assert out.shape == (batch, output_dim)
    assert jnp.allclose(out, ref, atol=1e-5, rtol=1e-5)

    print("KERNEL_OK")
</pallas_src>

<mosaic_0001>
module attributes {stable_mosaic.version = 11 : i64} {
  func.func @affine_kernel(%arg0: i32, %arg1: memref<8x256xf32, #tpu.memory_space<vmem>>, %arg2: memref<8xf32, #tpu.memory_space<smem>>, %arg3: memref<1xf32, #tpu.memory_space<smem>>, %arg4: memref<1x256xf32, #tpu.memory_space<vmem>>) attributes {dimension_semantics = [#tpu.dimension_semantics<parallel>], iteration_bounds = array<i64: 2>, scalar_prefetch = 0 : i64, scratch_operands = 0 : i64, tpu.core_type = #tpu.core_type<tc>, window_params = [{transform_indices = @transform_0, window_bounds = array<i64: 8, 256>}, {transform_indices = @transform_1, window_bounds = array<i64: 8>}, {transform_indices = @transform_2, window_bounds = array<i64: 1>}, {transform_indices = @transform_3, window_bounds = array<i64: 1, 256>}]} {
    %c0 = arith.constant 0 : index
    %0 = memref.load %arg2[%c0] : memref<8xf32, #tpu.memory_space<smem>>
    %c0_0 = arith.constant 0 : index
    %c0_1 = arith.constant 0 : index
    %1 = vector.load %arg1[%c0_0, %c0_1] : memref<8x256xf32, #tpu.memory_space<vmem>>, vector<1x256xf32>
    %2 = vector.broadcast %0 : f32 to vector<1x256xf32>
    %3 = arith.mulf %2, %1 : vector<1x256xf32>
    %c1 = arith.constant 1 : index
    %4 = memref.load %arg2[%c1] : memref<8xf32, #tpu.memory_space<smem>>
    %c1_2 = arith.constant 1 : index
    %c0_3 = arith.constant 0 : index
    %5 = vector.load %arg1[%c1_2, %c0_3] : memref<8x256xf32, #tpu.memory_space<vmem>>, vector<1x256xf32>
    %6 = vector.broadcast %4 : f32 to vector<1x256xf32>
    %7 = arith.mulf %6, %5 : vector<1x256xf32>
    %8 = arith.addf %3, %7 : vector<1x256xf32>
    %c2 = arith.constant 2 : index
    %9 = memref.load %arg2[%c2] : memref<8xf32, #tpu.memory_space<smem>>
    %c2_4 = arith.constant 2 : index
    %c0_5 = arith.constant 0 : index
    %10 = vector.load %arg1[%c2_4, %c0_5] : memref<8x256xf32, #tpu.memory_space<vmem>>, vector<1x256xf32>
    %11 = vector.broadcast %9 : f32 to vector<1x256xf32>
    %12 = arith.mulf %11, %10 : vector<1x256xf32>
    %13 = arith.addf %8, %12 : vector<1x256xf32>
    %c3 = arith.constant 3 : index
    %14 = memref.load %arg2[%c3] : memref<8xf32, #tpu.memory_space<smem>>
    %c3_6 = arith.constant 3 : index
    %c0_7 = arith.constant 0 : index
    %15 = vector.load %arg1[%c3_6, %c0_7] : memref<8x256xf32, #tpu.memory_space<vmem>>, vector<1x256xf32>
    %16 = vector.broadcast %14 : f32 to vector<1x256xf32>
    %17 = arith.mulf %16, %15 : vector<1x256xf32>
    %18 = arith.addf %13, %17 : vector<1x256xf32>
    %c4 = arith.constant 4 : index
    %19 = memref.load %arg2[%c4] : memref<8xf32, #tpu.memory_space<smem>>
    %c4_8 = arith.constant 4 : index
    %c0_9 = arith.constant 0 : index
    %20 = vector.load %arg1[%c4_8, %c0_9] : memref<8x256xf32, #tpu.memory_space<vmem>>, vector<1x256xf32>
    %21 = vector.broadcast %19 : f32 to vector<1x256xf32>
    %22 = arith.mulf %21, %20 : vector<1x256xf32>
    %23 = arith.addf %18, %22 : vector<1x256xf32>
    %c5 = arith.constant 5 : index
    %24 = memref.load %arg2[%c5] : memref<8xf32, #tpu.memory_space<smem>>
    %c5_10 = arith.constant 5 : index
    %c0_11 = arith.constant 0 : index
    %25 = vector.load %arg1[%c5_10, %c0_11] : memref<8x256xf32, #tpu.memory_space<vmem>>, vector<1x256xf32>
    %26 = vector.broadcast %24 : f32 to vector<1x256xf32>
    %27 = arith.mulf %26, %25 : vector<1x256xf32>
    %28 = arith.addf %23, %27 : vector<1x256xf32>
    %c6 = arith.constant 6 : index
    %29 = memref.load %arg2[%c6] : memref<8xf32, #tpu.memory_space<smem>>
    %c6_12 = arith.constant 6 : index
    %c0_13 = arith.constant 0 : index
    %30 = vector.load %arg1[%c6_12, %c0_13] : memref<8x256xf32, #tpu.memory_space<vmem>>, vector<1x256xf32>
    %31 = vector.broadcast %29 : f32 to vector<1x256xf32>
    %32 = arith.mulf %31, %30 : vector<1x256xf32>
    %33 = arith.addf %28, %32 : vector<1x256xf32>
    %c7 = arith.constant 7 : index
    %34 = memref.load %arg2[%c7] : memref<8xf32, #tpu.memory_space<smem>>
    %c7_14 = arith.constant 7 : index
    %c0_15 = arith.constant 0 : index
    %35 = vector.load %arg1[%c7_14, %c0_15] : memref<8x256xf32, #tpu.memory_space<vmem>>, vector<1x256xf32>
    %36 = vector.broadcast %34 : f32 to vector<1x256xf32>
    %37 = arith.mulf %36, %35 : vector<1x256xf32>
    %38 = arith.addf %33, %37 : vector<1x256xf32>
    %c0_16 = arith.constant 0 : index
    %39 = memref.load %arg3[%c0_16] : memref<1xf32, #tpu.memory_space<smem>>
    %40 = vector.broadcast %39 : f32 to vector<1x256xf32>
    %41 = arith.addf %38, %40 : vector<1x256xf32>
    %c0_17 = arith.constant 0 : index
    %c0_18 = arith.constant 0 : index
    %42 = vector.load %arg4[%c0_17, %c0_18] : memref<1x256xf32, #tpu.memory_space<vmem>>, vector<1x256xf32>
    tpu.vector_store %arg4[%c0_17, %c0_18], %41 {strides = array<i32>} : memref<1x256xf32, #tpu.memory_space<vmem>>, vector<1x256xf32>,
    return
  }
  func.func @transform_0(%arg0: i32) -> (i32, i32) {
    %c0_i32 = arith.constant 0 : i32
    %c0_i32_0 = arith.constant 0 : i32
    return %c0_i32, %arg0 : i32, i32
  }
  func.func @transform_1(%arg0: i32) -> i32 {
    %c0_i32 = arith.constant 0 : i32
    %c0_i32_0 = arith.constant 0 : i32
    return %c0_i32 : i32
  }
  func.func @transform_2(%arg0: i32) -> i32 {
    %c0_i32 = arith.constant 0 : i32
    %c0_i32_0 = arith.constant 0 : i32
    return %c0_i32 : i32
  }
  func.func @transform_3(%arg0: i32) -> (i32, i32) {
    %c0_i32 = arith.constant 0 : i32
    %c0_i32_0 = arith.constant 0 : i32
    return %c0_i32, %arg0 : i32, i32
  }
}

</mosaic_0001>

<llo_original>
// kernel: mlp_forward.1
$region0: #{mlp_forward.1}
  #allocation0 [shape = 'u32[]', space=smem, size = 0x4, offset = 0x4, fixed_abs, tag = 'smem constant byte address 0x4 - core index']
  #allocation1 [shape = 'u32[144,128]{1,0:T(1,128)}', space=vmem, size = 0x12000, scoped, tag = 'internal scratch']
  #allocation2 [shape = 'f32[1]{0:T(128)S(6)}', space=smem, size = 0x200, scoped, tag = 'scoped memory for mlp_forward.1']
  %s0 = inlined_call_operand.vmem [shape: f32[8,512], index: 0, kind: input, shape index: {}]
  %s1 = inlined_call_operand.vmem [shape: f32[8], index: 1, kind: input, shape index: {}]
  %s2 = inlined_call_operand.<no memory space> [shape: f32[1], index: 2, kind: input, shape index: {}]
  %s3 = inlined_call_operand.vmem [shape: f32[1,512], index: 3, kind: output, shape index: {}]
  %s4 = sld [smem:[#allocation0]]
  $region49: #{mlp_forward.1} parent=0
    _
  %s6 = ssub.s32 1, %s4
  %s7 = scalar_select 0, %s6, %s4
  %8 = sst [smem:[#allocation2]] %s2
  $region1: #{mlp_forward.1} parent=0
    #allocation3 [shape = 'u8[512]{0}', space=smem, size = 0x200, scoped, tag = 'input window, operand 1, single buffered']
    #allocation4 [shape = 's32[2]{0}', space=sflag, size = 0x8, scoped, tag = 'scoped memory for mlp_forward.1']
    %9 = vsyncpa [#allocation4], 0
    loop: start=0, step=1, limit=4
    $region2: #{mlp_forward.1} parent=1 // loop_pre_header
      _
    $region3: #{mlp_forward.1} parent=1 // loop_header
      %s11 = sphi 0, %s15
      %p12 = scmp.ge.s32.totalorder %s11, 4
      %s21 = sphi 0, %s23
      %s24 = sphi 0, %s21
      %s25 = sphi 0, %s24
      %s41 = sphi 0, %s25
      %s45 = sphi 0, %s45
      %s47 = sphi 0, %s45
      %s48 = sphi 0, %s47
      %s62 = sphi 0, %s48
      %s66 = sphi 0, %s66
      %s68 = sphi 0, %s66
      %s69 = sphi 0, %s68
      %s83 = sphi 0, %s69
      %s89 = sphi 0, %s91
      %s92 = sphi 0, %s89
      %s93 = sphi 0, %s92
      %s109 = sphi 0, %s93
    $region4: #{mlp_forward.1} parent=1 // loop_header_branch
      %14 = sbr.rel (%p12) target = $region8
    $region5: #{mlp_forward.1} parent=1 // loop_body
      %s16 = ssub.s32 %s11, 1
      %s17 = ssub.s32 %s11, 2
      %s18 = sadd.s32 %s11, 1
      %s19 = ssub.s32 %s11, %s18
      %p20 = scmp.eq.s32.totalorder %s19, 0
      %s22 = sadd.s32 %s21, 1
      %s23 = scalar_select %p20, %s21, %s22
      %p26 = pneg %p20
      %p27 = scmp.eq.s32.totalorder %s11, 1
      %p28 = por %p26, %p27
      %p29 = scmp.ne.s32.totalorder %s21, %s24
      %p30 = scmp.eq.s32.totalorder %s11, 0
      %p31 = por %p29, %p30
      %p32 = scmp.ne.s32.totalorder %s21, %s24
      %p33 = scmp.eq.s32.totalorder %s16, 1
      %p34 = por %p32, %p33
      %p35 = scmp.ne.s32.totalorder %s24, %s25
      %p36 = scmp.eq.s32.totalorder %s16, 0
      %p37 = por %p35, %p36
      %p38 = scmp.ne.s32.totalorder %s24, %s25
      %p39 = scmp.eq.s32.totalorder %s17, 1
      %p40 = por %p38, %p39
      %p42 = scmp.ne.s32.totalorder %s25, %s41
      %p43 = scmp.eq.s32.totalorder %s17, 0
      %p44 = por %p42, %p43
      %s46 = sadd.s32 %s45, 1
      %p49 = scmp.eq.s32.totalorder %s11, 1
      %p50 = scmp.ne.s32.totalorder %s45, %s47
      %p51 = scmp.eq.s32.totalorder %s11, 0
      %p52 = por %p50, %p51
      %p53 = scmp.ne.s32.totalorder %s45, %s47
      %p54 = scmp.eq.s32.totalorder %s16, 1
      %p55 = por %p53, %p54
      %p56 = scmp.ne.s32.totalorder %s47, %s48
      %p57 = scmp.eq.s32.totalorder %s16, 0
      %p58 = por %p56, %p57
      %p59 = scmp.ne.s32.totalorder %s47, %s48
      %p60 = scmp.eq.s32.totalorder %s17, 1
      %p61 = por %p59, %p60
      %p63 = scmp.ne.s32.totalorder %s48, %s62
      %p64 = scmp.eq.s32.totalorder %s17, 0
      %p65 = por %p63, %p64
      %s67 = sadd.s32 %s66, 1
      %p70 = scmp.eq.s32.totalorder %s11, 1
      %p71 = scmp.ne.s32.totalorder %s66, %s68
      %p72 = scmp.eq.s32.totalorder %s11, 0
      %p73 = por %p71, %p72
      %p74 = scmp.ne.s32.totalorder %s66, %s68
      %p75 = scmp.eq.s32.totalorder %s16, 1
      %p76 = por %p74, %p75
      %p77 = scmp.ne.s32.totalorder %s68, %s69
      %p78 = scmp.eq.s32.totalorder %s16, 0
      %p79 = por %p77, %p78
      %p80 = scmp.ne.s32.totalorder %s68, %s69
      %p81 = scmp.eq.s32.totalorder %s17, 1
      %p82 = por %p80, %p81
      %p84 = scmp.ne.s32.totalorder %s69, %s83
      %p85 = scmp.eq.s32.totalorder %s17, 0
      %p86 = por %p84, %p85
      %s87 = ssub.s32 %s11, %s18
      %p88 = scmp.eq.s32.totalorder %s87, 0
      %s90 = sadd.s32 %s89, 1
      %s91 = scalar_select %p88, %s89, %s90
      %p94 = pneg %p88
      %p95 = scmp.eq.s32.totalorder %s11, 1
      %p96 = por %p94, %p95
      %p97 = scmp.ne.s32.totalorder %s89, %s92
      %p98 = scmp.eq.s32.totalorder %s11, 0
      %p99 = por %p97, %p98
      %p100 = scmp.ne.s32.totalorder %s89, %s92
      %p101 = scmp.eq.s32.totalorder %s16, 1
      %p102 = por %p100, %p101
      %p103 = scmp.ne.s32.totalorder %s92, %s93
      %p104 = scmp.eq.s32.totalorder %s16, 0
      %p105 = por %p103, %p104
      %p106 = scmp.ne.s32.totalorder %s92, %s93
      %p107 = scmp.eq.s32.totalorder %s17, 1
      %p108 = por %p106, %p107
      %p110 = scmp.ne.s32.totalorder %s93, %s109
      %p111 = scmp.eq.s32.totalorder %s17, 0
      %p112 = por %p110, %p111
      %p113 = scmp.le.s32.totalorder 1, %s11
      %p114 = scmp.lt.s32.totalorder %s11, 3
      %p115 = pnand %p113, %p114
      %p116 = pneg %p115
      // Predicated region
      $region9: #{mlp_forward.1} parent=5 // pred_check
        _
      $region10: #{mlp_forward.1} parent=5 // pred_check_branch
        %118 = sbr.rel (%p115) target = $region12
      $region11: #{mlp_forward.1} parent=5 // pred_region
        %s119 = ssub.s32 %s11, 1
        // Predicated region
        $region13: #{mlp_forward.1} parent=11 // pred_check
          %p120 = pneg %p58
        $region14: #{mlp_forward.1} parent=11 // pred_check_branch
          %122 = sbr.rel (%p120) target = $region16
        $region15: #{mlp_forward.1} parent=11 // pred_region
          %s124 = ssub.s32 16, 16
          %125 = vsyncadd [#allocation4], %s124
          %s127 = sshll.u32 %s1, 4
          %s128 = int_to_ptr.vmem [resolvable:$true] %s127
          %130 = dma.vmem_to_smem %s128, 16, [#allocation3], [#allocation4]
        $region16: #{mlp_forward.1} parent=11 // pred_fallthru
          _
        // Predicated region
        $region17: #{mlp_forward.1} parent=11 // pred_check
          %p131 = pneg %p79
        $region18: #{mlp_forward.1} parent=11 // pred_check_branch
          %133 = sbr.rel (%p131) target = $region20
        $region19: #{mlp_forward.1} parent=11 // pred_region
          _
        $region20: #{mlp_forward.1} parent=11 // pred_fallthru
          _
      $region12: #{mlp_forward.1} parent=5 // pred_fallthru
        _
      %p134 = scmp.lt.s32.totalorder %s11, 2
      // Predicated region
      $region21: #{mlp_forward.1} parent=5 // pred_check
        %p135 = pneg %p134
      $region22: #{mlp_forward.1} parent=5 // pred_check_branch
        %137 = sbr.rel (%p135) target = $region24
      $region23: #{mlp_forward.1} parent=5 // pred_region
        // Predicated region
        $region25: #{mlp_forward.1} parent=23 // pred_check
          %p138 = pneg %p31
        $region26: #{mlp_forward.1} parent=23 // pred_check_branch
          %140 = sbr.rel (%p138) target = $region28
        $region27: #{mlp_forward.1} parent=23 // pred_region
          %s141 = smul.u32 2, %s11
          %p142 = scmp.lt.s32.totalorder %s141, 3
          %s143 = scalar_select %p142, %s141, 3
          %s144 = smul.addr %s143, 8
          %s145 = scalar_lea.vmem %s0, %s144
          %s146 = smul.u32 2, %s11
        $region28: #{mlp_forward.1} parent=23 // pred_fallthru
          _
      $region24: #{mlp_forward.1} parent=5 // pred_fallthru
        _
      %p147 = scmp.le.s32.totalorder 1, %s11
      %p148 = scmp.lt.s32.totalorder %s11, 3
      %p149 = pnand %p147, %p148
      %p150 = pneg %p149
      // Predicated region
      $region29: #{mlp_forward.1} parent=5 // pred_check
        _
      $region30: #{mlp_forward.1} parent=5 // pred_check_branch
        %152 = sbr.rel (%p149) target = $region32
      $region31: #{mlp_forward.1} parent=5 // pred_region
        %s153 = ssub.s32 %s11, 1
        // Predicated region
        $region33: #{mlp_forward.1} parent=31 // pred_check
          %p154 = pneg %p58
        $region34: #{mlp_forward.1} parent=31 // pred_check_branch
          %156 = sbr.rel (%p154) target = $region36
        $region35: #{mlp_forward.1} parent=31 // pred_region
          %157 = dma.done [#allocation4], 16
        $region36: #{mlp_forward.1} parent=31 // pred_fallthru
          _
        %158 = sfence
        %s159 = smul.u32 2, %s16
        %p160 = scmp.lt.s32.totalorder %s159, 3
        %s161 = scalar_select %p160, %s159, 3
        %s162 = smul.addr %s161, 8
        %s163 = scalar_lea.vmem %s0, %s162
        %p164 = pneg %p37
        %p165 = pneg %p34
        %p166 = pneg %p58
        %p167 = pneg %p55
        %p168 = pneg %p79
        %p169 = pneg %p76
        %p170 = pneg %p105
        %p171 = pneg %p102
        %s172 = smul.u32 2, %s16
        %p173 = scmp.lt.s32.totalorder %s172, 3
        %s174 = scalar_select %p173, %s172, 3
        %s175 = scalar_lea.vmem %s3, %s174
        %s176 = smul.u32 2, %s16
        %p177 = scmp.lt.s32.totalorder %s176, 3
        %s178 = scalar_select %p177, %s176, 3
        %s179 = smul.addr %s178, 8
        %s180 = scalar_lea.vmem %s0, %s179
        %s181 = smul.u32 2, %s16
        %s182 = smul.u32 2, %s16
        %p183 = scmp.lt.s32.totalorder %s182, 3
        %s184 = scalar_select %p183, %s182, 3
        %s185 = scalar_lea.vmem %s3, %s184
        %s186 = smul.u32 2, %s16
        %s187 = sld [smem:[#allocation3]]
        %v188 = vld [vmem:[%s180] ss:$8 sm:$0x3]
        %v189 = vstv %s187
        %v190 = vmul.f32 %v189, %v188
        %s191 = sld [smem:[#allocation3 + $0x1]]
        %s192 = scalar_lea.vmem %s180, 1
        %v193 = vld [vmem:[%s192] ss:$8 sm:$0x3]
        %v194 = vstv %s191
        %v195 = vmul.f32 %v194, %v193
        %v196 = vadd.f32 %v190, %v195
        %s197 = sld [smem:[#allocation3 + $0x2]]
        %s198 = scalar_lea.vmem %s180, 2
        %v199 = vld [vmem:[%s198] ss:$8 sm:$0x3]
        %v200 = vstv %s197
        %v201 = vmul.f32 %v200, %v199
        %v202 = vadd.f32 %v196, %v201
        %s203 = sld [smem:[#allocation3 + $0x3]]
        %s204 = scalar_lea.vmem %s180, 3
        %v205 = vld [vmem:[%s204] ss:$8 sm:$0x3]
        %v206 = vstv %s203
        %v207 = vmul.f32 %v206, %v205
        %v208 = vadd.f32 %v202, %v207
        %s209 = sld [smem:[#allocation3 + $0x4]]
        %s210 = scalar_lea.vmem %s180, 4
        %v211 = vld [vmem:[%s210] ss:$8 sm:$0x3]
        %v212 = vstv %s209
        %v213 = vmul.f32 %v212, %v211
        %v214 = vadd.f32 %v208, %v213
        %s215 = sld [smem:[#allocation3 + $0x5]]
        %s216 = scalar_lea.vmem %s180, 5
        %v217 = vld [vmem:[%s216] ss:$8 sm:$0x3]
        %v218 = vstv %s215
        %v219 = vmul.f32 %v218, %v217
        %v220 = vadd.f32 %v214, %v219
        %s221 = sld [smem:[#allocation3 + $0x6]]
        %s222 = scalar_lea.vmem %s180, 6
        %v223 = vld [vmem:[%s222] ss:$8 sm:$0x3]
        %v224 = vstv %s221
        %v225 = vmul.f32 %v224, %v223
        %v226 = vadd.f32 %v220, %v225
        %s227 = sld [smem:[#allocation3 + $0x7]]
        %s228 = scalar_lea.vmem %s180, 7
        %v229 = vld [vmem:[%s228] ss:$8 sm:$0x3]
        %v230 = vstv %s227
        %v231 = vmul.f32 %v230, %v229
        %v232 = vadd.f32 %v226, %v231
        %s233 = sld [smem:[#allocation2]]
        %v234 = vstv %s233
        %v235 = vadd.f32 %v232, %v234
        %v236 = vlaneseq
        %vm237 = vcmp.ge.s32.totalorder %v236, 0
        %vm238 = vcmp.lt.s32.totalorder %v236, 256
        %vm239 = vmand %vm237, %vm238
        %240 = vst.msk [vmem:[%s185] sm:$0x3] %vm239, %v235
        %s241 = smul.u32 2, %s16
        %p242 = scmp.lt.s32.totalorder %s241, 3
        %s243 = scalar_select %p242, %s241, 3
        %s244 = scalar_lea.vmem %s3, %s243
        // Predicated region
        $region37: #{mlp_forward.1} parent=31 // pred_check
          %p245 = pneg %p102
        $region38: #{mlp_forward.1} parent=31 // pred_check_branch
          %247 = sbr.rel (%p245) target = $region40
        $region39: #{mlp_forward.1} parent=31 // pred_region
          %s248 = smul.u32 2, %s16
        $region40: #{mlp_forward.1} parent=31 // pred_fallthru
          _
      $region32: #{mlp_forward.1} parent=5 // pred_fallthru
        _
      %p249 = scmp.le.s32.totalorder 2, %s11
      // Predicated region
      $region41: #{mlp_forward.1} parent=5 // pred_check
        %p250 = pneg %p249
      $region42: #{mlp_forward.1} parent=5 // pred_check_branch
        %252 = sbr.rel (%p250) target = $region44
      $region43: #{mlp_forward.1} parent=5 // pred_region
        %s253 = ssub.s32 %s11, 2
        // Predicated region
        $region45: #{mlp_forward.1} parent=43 // pred_check
          %p254 = pneg %p108
        $region46: #{mlp_forward.1} parent=43 // pred_check_branch
          %256 = sbr.rel (%p254) target = $region48
        $region47: #{mlp_forward.1} parent=43 // pred_region
          %s257 = smul.u32 2, %s17
          %p258 = scmp.lt.s32.totalorder %s257, 3
          %s259 = scalar_select %p258, %s257, 3
          %s260 = scalar_lea.vmem %s3, %s259
        $region48: #{mlp_forward.1} parent=43 // pred_fallthru
          _
      $region44: #{mlp_forward.1} parent=5 // pred_fallthru
        _
    $region6: #{mlp_forward.1} parent=1 // loop_footer
      %s15 = sadd.s32 1, %s11
    $region7: #{mlp_forward.1} parent=1 // loop_footer_branch
      %10 = sbr.rel target = $region3
    $region8: #{mlp_forward.1} parent=1 // loop_exit
      _
    %261 = vsyncpa [#allocation4], 1
    %s262 = scalar_lea.sflag [#allocation4], 1
    %263 = vsyncpa %s262, 1

</llo_original>
